<compile_context>
chip_gen: v7x
topology: tpu7x:2x2x1
jax: 0.10.0
libtpu: 0.0.40
codegen_flags: <defaults>
</compile_context>

<pallas_src>
import functools
import math

import jax
import jax.numpy as jnp
import numpy as np
from jax.experimental import pallas as pl
from jax.experimental.pallas import tpu as pltpu

LANES = 128
SUBLANES = 8
NCORES = 2            # leading 'parallel' axis; ~2x streaming on v7x, no-op on 1-TC chips
ROW_TILE_MAX = 1024   # 1024 rows x 128 lanes x 4B = 512 KiB per f32 tile


def _cdiv(a, b):
    return -(-a // b)


def _round_up(a, b):
    return _cdiv(a, b) * b


def _abs_pow(x, p):
    """|x|^p kept on the VPU: integer powers expand to multiplies (no EUP pow)."""
    if p == 2:
        return x * x
    if p == 1:
        return jnp.abs(x)
    if isinstance(p, int) and p > 0:
        a = jnp.abs(x)
        r = a
        for _ in range(int(p) - 1):
            r = r * a
        return r
    return jnp.abs(x) ** p


def _fused_norm_pow_kernel(gb_ref, wid_ref, first_ref, last_ref, valid_ref,
                           x_ref, o_ref, acc_ref, *, p, tmax, row_tile):
    """Accumulate sum(|x|^p) per weight into an (8,128) vreg-shaped accumulator.

    grid = (core, tile-in-core-sequence); the scalar-prefetched schedule tells
    each step which weight it belongs to and whether it starts / ends that
    weight's (per-core) tile range.
    """
    c = pl.program_id(0)
    j = pl.program_id(1)
    idx = c * tmax + j

    @pl.when(first_ref[idx] == 1)
    def _():
        acc_ref[...] = jnp.zeros_like(acc_ref)

    @pl.when(valid_ref[idx] == 1)
    def _():
        x = x_ref[...].astype(jnp.float32)           # (row_tile, 128)
        xp = _abs_pow(x, p)
        # (row_tile,128) -> (row_tile/8, 8, 128) is a pure vreg reinterpretation;
        # the axis-0 sum is elementwise vreg adds (VPU only, no per-step XLU
        # cross-lane reduce, no (1,1) scalar read-modify-write).
        acc_ref[...] += jnp.sum(
            xp.reshape(row_tile // SUBLANES, SUBLANES, LANES), axis=0)

    @pl.when(last_ref[idx] == 1)
    def _():
        o_ref[0, 0] = acc_ref[...]


def _build_schedule(ntiles, ncores):
    """Split each weight's contiguous tile range across cores; emit per-tile
    (global_block, weight_id, first, last, valid) schedule arrays."""
    num_w = len(ntiles)
    seqs = [[] for _ in range(ncores)]                 # (gblock, wid, first, last)
    written = [[False] * num_w for _ in range(ncores)]
    start = 0
    for w, nt in enumerate(ntiles):
        base, rem = divmod(nt, ncores)
        off = 0
        for c in range(ncores):
            cnt = base + (1 if c < rem else 0)
            if cnt == 0:
                continue
            for k in range(cnt):
                seqs[c].append((start + off + k, w,
                                1 if k == 0 else 0,
                                1 if k == cnt - 1 else 0))
            written[c][w] = True
            off += cnt
        start += nt

    tmax = max(1, max(len(s) for s in seqs))
    gb, wid, first, last, valid = [], [], [], [], []
    for c in range(ncores):
        seq = seqs[c]
        pad_gb = seq[-1][0] if seq else 0              # repeat block -> no extra DMA
        for (g, w, f, l) in seq:
            gb.append(g); wid.append(w); first.append(f); last.append(l); valid.append(1)
        for _ in range(tmax - len(seq)):
            gb.append(pad_gb); wid.append(num_w)       # dummy output slot
            first.append(0); last.append(0); valid.append(0)

    arrs = tuple(jnp.asarray(a, dtype=jnp.int32)
                 for a in (gb, wid, first, last, valid))
    return arrs, tmax, jnp.asarray(written, dtype=bool)


def regularization_loss(weight_list, weight_decay, p=2,
                        row_tile=ROW_TILE_MAX, ncores=NCORES):
    """JAX/Pallas equivalent of Regularization.regularization_loss (fused)."""
    if not weight_list:
        return jnp.float32(0.0)
    num_w = len(weight_list)

    # Keep the weights' native (possibly sub-32-bit) dtype for the HBM stream;
    # the kernel upcasts to f32 inside VMEM.
    dt = jnp.result_type(*[w.dtype for _, w in weight_list])
    if not jnp.issubdtype(dt, jnp.floating):
        dt = jnp.float32

    # Tile size: big (0.5 MiB f32) for real models, shrunk for tiny ones so
    # per-weight alignment padding stays negligible.  Must be a multiple of 8.
    max_rows = max(_cdiv(math.prod(w.shape), LANES) for _, w in weight_list)
    row_tile = max(SUBLANES, min(row_tile, _round_up(max_rows, SUBLANES)))
    chunk = row_tile * LANES

    # Single lane-dense slab: [w0 | zeros | w1 | zeros | ...], each weight
    # aligned to a whole tile.  One concatenate = the only copy; no jnp.pad op.
    parts, ntiles = [], []
    for _name, w in weight_list:
        flat = w.reshape(-1)
        if flat.dtype != dt:
            flat = flat.astype(dt)
        n = flat.shape[0]
        nt = max(1, _cdiv(n, chunk))
        pad = nt * chunk - n
        parts.append(flat)
        if pad:
            parts.append(jnp.zeros((pad,), dt))        # zeros contribute 0 to |x|^p
        ntiles.append(nt)
    slab = jnp.concatenate(parts).reshape(-1, LANES)   # (total_tiles*row_tile, 128)

    (gb, wid, first, last, valid), tmax, written = _build_schedule(ntiles, ncores)

    kernel = functools.partial(_fused_norm_pow_kernel,
                               p=p, tmax=tmax, row_tile=row_tile)
    out = pl.pallas_call(
        kernel,
        # one (8,128) partial-sum slab per (core, weight); slot num_w is a dummy
        # target for padded schedule entries.
        out_shape=jax.ShapeDtypeStruct((ncores, num_w + 1, SUBLANES, LANES),
                                       jnp.float32),
        grid_spec=pltpu.PrefetchScalarGridSpec(
            num_scalar_prefetch=5,
            grid=(ncores, tmax),
            in_specs=[pl.BlockSpec(
                (row_tile, LANES),
                # NOTE: on v7x one could add pipeline_mode=pl.Buffered(3) here.
                lambda c, j, gb_r, wid_r, f_r, l_r, v_r: (gb_r[c * tmax + j], 0))],
            out_specs=pl.BlockSpec(
                (1, 1, SUBLANES, LANES),
                lambda c, j, gb_r, wid_r, f_r, l_r, v_r:
                    (c, wid_r[c * tmax + j], 0, 0)),
            scratch_shapes=[pltpu.VMEM((SUBLANES, LANES), jnp.float32)],
        ),
        compiler_params=pltpu.CompilerParams(
            dimension_semantics=("parallel", "arbitrary"),
        ),
    )(gb, wid, first, last, valid, slab)

    # Cheap scalar epilogue in JAX: cross-lane reduce once per weight, ^(1/p),
    # sum across weights, * weight_decay.
    per_cw = jnp.sum(out[:, :num_w], axis=(-1, -2))            # (ncores, num_w)
    per_cw = jnp.where(written, per_cw, 0.0)                   # drop unwritten slots
    per_w = jnp.sum(per_cw, axis=0)                            # sum(|w|^p) per weight
    if p == 2:
        norms = jnp.sqrt(per_w)
    elif p == 1:
        norms = per_w
    else:
        norms = per_w ** (1.0 / p)
    # TODO(synk): torch.norm(p=0) (nonzero count) has no float-power form; only p >= 1 here.
    return jnp.asarray(weight_decay, jnp.float32) * jnp.sum(norms)


def make_synthetic_model_weights(key):
    """Deterministic synthetic 'model' parameters; mimics named_parameters()
    with only the 'weight' entries kept (biases filtered out, as in get_weight)."""
    k1, k2, k3 = jax.random.split(key, 3)
    conv_w = jax.random.normal(k1, (4, 4, 3, 3), dtype=jnp.float32)   # NCHW conv kernel
    fc1_w = jax.random.normal(k2, (32, 16), dtype=jnp.float32)
    fc2_w = jax.random.normal(k3, (8, 32), dtype=jnp.float32)
    return [
        ("conv1.weight", conv_w),
        ("fc1.weight", fc1_w),
        ("fc2.weight", fc2_w),
    ]


if __name__ == "__main__":
    key = jax.random.PRNGKey(0)
    weight_list = make_synthetic_model_weights(key)

    weight_decay = 0.01
    p = 2

    loss = regularization_loss(weight_list, weight_decay, p=p)
    loss = jax.block_until_ready(loss)

    # Reference check in plain JAX (torch.norm semantics).
    ref = jnp.float32(0.0)
    for _n, w in weight_list:
        ref = ref + jnp.sum(jnp.abs(w.astype(jnp.float32)) ** p) ** (1.0 / p)
    ref = jnp.float32(weight_decay) * ref
    assert jnp.allclose(loss, ref, rtol=1e-5, atol=1e-6), (float(loss), float(ref))

    print("KERNEL_OK")
</pallas_src>

<mosaic_0001>
module attributes {stable_mosaic.version = 11 : i64} {
  func.func @_fused_norm_pow_kernel(%arg0: i32, %arg1: i32, %arg2: memref<6xi32, #tpu.memory_space<smem>>, %arg3: memref<6xi32, #tpu.memory_space<smem>>, %arg4: memref<6xi32, #tpu.memory_space<smem>>, %arg5: memref<6xi32, #tpu.memory_space<smem>>, %arg6: memref<6xi32, #tpu.memory_space<smem>>, %arg7: memref<8x128xf32, #tpu.memory_space<vmem>>, %arg8: memref<1x1x8x128xf32, #tpu.memory_space<vmem>>, %arg9: memref<8x128xf32, #tpu.memory_space<vmem>>) attributes {dimension_semantics = [#tpu.dimension_semantics<parallel>, #tpu.dimension_semantics<arbitrary>], iteration_bounds = array<i64: 2, 3>, scalar_prefetch = 5 : i64, scratch_operands = 1 : i64, tpu.core_type = #tpu.core_type<tc>, window_params = [{transform_indices = @transform_0, window_bounds = array<i64: 8, 128>}, {transform_indices = @transform_1, window_bounds = array<i64: 1, 1, 8, 128>}]} {
    %c3_i32 = arith.constant 3 : i32
    %0 = arith.muli %arg0, %c3_i32 : i32
    %1 = arith.addi %0, %arg1 : i32
    %2 = arith.index_cast %1 : i32 to index
    %3 = memref.load %arg4[%2] : memref<6xi32, #tpu.memory_space<smem>>
    %c1_i32 = arith.constant 1 : i32
    %4 = arith.cmpi eq, %3, %c1_i32 : i32
    %5 = arith.extui %4 : i1 to i32
    %c0_i32 = arith.constant 0 : i32
    %6 = arith.cmpi ne, %5, %c0_i32 : i32
    scf.if %6 {
      %cst = arith.constant 0.000000e+00 : f32
      %17 = vector.broadcast %cst : f32 to vector<8x128xf32>
      %c0 = arith.constant 0 : index
      %c0_4 = arith.constant 0 : index
      %18 = vector.load %arg9[%c0, %c0_4] : memref<8x128xf32, #tpu.memory_space<vmem>>, vector<8x128xf32>
      tpu.vector_store %arg9[%c0, %c0_4], %17 {strides = array<i32>} : memref<8x128xf32, #tpu.memory_space<vmem>>, vector<8x128xf32>,
    } else {
    }
    %7 = arith.index_cast %1 : i32 to index
    %8 = memref.load %arg6[%7] : memref<6xi32, #tpu.memory_space<smem>>
    %c1_i32_0 = arith.constant 1 : i32
    %9 = arith.cmpi eq, %8, %c1_i32_0 : i32
    %10 = arith.extui %9 : i1 to i32
    %c0_i32_1 = arith.constant 0 : i32
    %11 = arith.cmpi ne, %10, %c0_i32_1 : i32
    scf.if %11 {
      %c0 = arith.constant 0 : index
      %c0_4 = arith.constant 0 : index
      %17 = vector.load %arg7[%c0, %c0_4] : memref<8x128xf32, #tpu.memory_space<vmem>>, vector<8x128xf32>
      %18 = arith.mulf %17, %17 : vector<8x128xf32>
      %c0_5 = arith.constant 0 : index
      %c0_6 = arith.constant 0 : index
      %19 = vector.load %arg9[%c0_5, %c0_6] : memref<8x128xf32, #tpu.memory_space<vmem>>, vector<8x128xf32>
      %20 = vector.shape_cast %18 : vector<8x128xf32> to vector<1x8x128xf32>
      %cst = arith.constant dense<0.000000e+00> : vector<8x128xf32>
      %21 = vector.multi_reduction <add>, %20, %cst [0] : vector<1x8x128xf32> to vector<8x128xf32>
      %22 = arith.addf %19, %21 : vector<8x128xf32>
      %c0_7 = arith.constant 0 : index
      %c0_8 = arith.constant 0 : index
      %23 = vector.load %arg9[%c0_7, %c0_8] : memref<8x128xf32, #tpu.memory_space<vmem>>, vector<8x128xf32>
      tpu.vector_store %arg9[%c0_7, %c0_8], %22 {strides = array<i32>} : memref<8x128xf32, #tpu.memory_space<vmem>>, vector<8x128xf32>,
    } else {
    }
    %12 = arith.index_cast %1 : i32 to index
    %13 = memref.load %arg5[%12] : memref<6xi32, #tpu.memory_space<smem>>
    %c1_i32_2 = arith.constant 1 : i32
    %14 = arith.cmpi eq, %13, %c1_i32_2 : i32
    %15 = arith.extui %14 : i1 to i32
    %c0_i32_3 = arith.constant 0 : i32
    %16 = arith.cmpi ne, %15, %c0_i32_3 : i32
    scf.if %16 {
      %c0 = arith.constant 0 : index
      %c0_4 = arith.constant 0 : index
      %17 = vector.load %arg9[%c0, %c0_4] : memref<8x128xf32, #tpu.memory_space<vmem>>, vector<8x128xf32>
      %c0_5 = arith.constant 0 : index
      %c0_6 = arith.constant 0 : index
      %c0_7 = arith.constant 0 : index
      %c0_8 = arith.constant 0 : index
      %18 = vector.load %arg8[%c0_5, %c0_6, %c0_7, %c0_8] : memref<1x1x8x128xf32, #tpu.memory_space<vmem>>, vector<1x1x8x128xf32>
      %19 = vector.shape_cast %18 : vector<1x1x8x128xf32> to vector<8x128xf32>
      %20 = vector.shape_cast %17 : vector<8x128xf32> to vector<1x1x8x128xf32>
      tpu.vector_store %arg8[%c0_5, %c0_6, %c0_7, %c0_8], %20 {strides = array<i32>} : memref<1x1x8x128xf32, #tpu.memory_space<vmem>>, vector<1x1x8x128xf32>,
    } else {
    }
    return
  }
  func.func @transform_0(%arg0: i32, %arg1: i32, %arg2: memref<6xi32, #tpu.memory_space<smem>>, %arg3: memref<6xi32, #tpu.memory_space<smem>>, %arg4: memref<6xi32, #tpu.memory_space<smem>>, %arg5: memref<6xi32, #tpu.memory_space<smem>>, %arg6: memref<6xi32, #tpu.memory_space<smem>>) -> (i32, i32) {
    %c3_i32 = arith.constant 3 : i32
    %0 = arith.muli %arg0, %c3_i32 : i32
    %1 = arith.addi %0, %arg1 : i32
    %2 = arith.index_cast %1 : i32 to index
    %3 = memref.load %arg2[%2] : memref<6xi32, #tpu.memory_space<smem>>
    %c0_i32 = arith.constant 0 : i32
    %c0_i32_0 = arith.constant 0 : i32
    return %3, %c0_i32 : i32, i32
  }
  func.func @transform_1(%arg0: i32, %arg1: i32, %arg2: memref<6xi32, #tpu.memory_space<smem>>, %arg3: memref<6xi32, #tpu.memory_space<smem>>, %arg4: memref<6xi32, #tpu.memory_space<smem>>, %arg5: memref<6xi32, #tpu.memory_space<smem>>, %arg6: memref<6xi32, #tpu.memory_space<smem>>) -> (i32, i32, i32, i32) {
    %c3_i32 = arith.constant 3 : i32
    %0 = arith.muli %arg0, %c3_i32 : i32
    %1 = arith.addi %0, %arg1 : i32
    %2 = arith.index_cast %1 : i32 to index
    %3 = memref.load %arg3[%2] : memref<6xi32, #tpu.memory_space<smem>>
    %c0_i32 = arith.constant 0 : i32
    %c0_i32_0 = arith.constant 0 : i32
    %c0_i32_1 = arith.constant 0 : i32
    return %arg0, %3, %c0_i32, %c0_i32_0 : i32, i32, i32, i32
  }
}

</mosaic_0001>

<llo_original>
// kernel: tpu_custom_call.1
$region0: #{tpu_custom_call.1}
  #allocation0 [shape = 'u32[]', space=smem, size = 0x4, offset = 0x4, fixed_abs, tag = 'smem constant byte address 0x4 - core index']
  #allocation1 [shape = 'u32[144,128]{1,0:T(1,128)}', space=vmem, size = 0x12000, scoped, tag = 'internal scratch']
  #allocation2 [shape = 'f32[8,128]{1,0:T(8,128)}', space=vmem, size = 0x1000, scoped, tag = 'scratch operand']
  #allocation3 [shape = 's32[1]{0}', space=sflag, size = 0x4, scoped, tag = 'scoped memory for tpu_custom_call.1']
  #allocation4 [shape = 'u8[512]{0}', space=smem, size = 0x200, scoped, tag = 'prefetched SMEM operand 0']
  #allocation5 [shape = 'u8[512]{0}', space=smem, size = 0x200, scoped, tag = 'prefetched SMEM operand 1']
  #allocation6 [shape = 'u8[512]{0}', space=smem, size = 0x200, scoped, tag = 'prefetched SMEM operand 2']
  #allocation7 [shape = 'u8[512]{0}', space=smem, size = 0x200, scoped, tag = 'prefetched SMEM operand 3']
  #allocation8 [shape = 'u8[512]{0}', space=smem, size = 0x200, scoped, tag = 'prefetched SMEM operand 4']
  %s0 = inlined_call_operand.hbm [shape: s32[6], index: 0, kind: input, shape index: {}]
  %s1 = inlined_call_operand.vmem [shape: s32[6], index: 1, kind: input, shape index: {}]
  %s2 = inlined_call_operand.vmem [shape: s32[6], index: 2, kind: input, shape index: {}]
  %s3 = inlined_call_operand.vmem [shape: s32[6], index: 3, kind: input, shape index: {}]
  %s4 = inlined_call_operand.vmem [shape: s32[6], index: 4, kind: input, shape index: {}]
  %s5 = inlined_call_operand.hbm [shape: f32[24,128], index: 5, kind: input, shape index: {}]
  %s6 = inlined_call_operand.hbm [shape: f32[2,4,8,128], index: 6, kind: output, shape index: {}]
  %s7 = sld [smem:[#allocation0]]
  $region53: #{tpu_custom_call.1} parent=0
    _
  %s9 = ssub.s32 1, %s7
  %s10 = scalar_select 0, %s9, %s7
  %12 = dma.hbm_to_smem %s0, 16, [#allocation4], [#allocation3]
  %s13 = sshll.u32 %s1, 4
  %s14 = int_to_ptr.vmem [resolvable:$true] %s13
  %16 = dma.vmem_to_smem %s14, 16, [#allocation5], [#allocation3]
  %s17 = sshll.u32 %s2, 4
  %s18 = int_to_ptr.vmem [resolvable:$true] %s17
  %20 = dma.vmem_to_smem %s18, 16, [#allocation6], [#allocation3]
  %s21 = sshll.u32 %s3, 4
  %s22 = int_to_ptr.vmem [resolvable:$true] %s21
  %24 = dma.vmem_to_smem %s22, 16, [#allocation7], [#allocation3]
  %s25 = sshll.u32 %s4, 4
  %s26 = int_to_ptr.vmem [resolvable:$true] %s25
  %28 = dma.vmem_to_smem %s26, 16, [#allocation8], [#allocation3]
  %29 = dma.done [#allocation3], 80
  %30 = sfence
  $region1: #{tpu_custom_call.1} parent=0
    #allocation9 [shape = 'u8[8192]{0}', space=vmem, size = 0x2000, scoped, tag = 'input window, operand 5']
    #allocation10 [shape = 's32[2]{0}', space=sflag, size = 0x8, scoped, tag = 'scoped memory for tpu_custom_call.1']
    #allocation11 [shape = 's32[2]{0}', space=sflag, size = 0x8, scoped, tag = 'scoped memory for tpu_custom_call.1']
    #allocation12 [shape = 'u8[8192]{0}', space=vmem, size = 0x2000, scoped, tag = 'output window, operand 0']
    %31 = vsyncpa [#allocation10], 0
    %s32 = scalar_lea.sflag [#allocation10], 1
    %33 = vsyncpa %s32, 0
    %34 = vsyncpa [#allocation11], 0
    %s35 = scalar_lea.sflag [#allocation11], 1
    %36 = vsyncpa %s35, 0
    loop: start=0, step=1, limit=8
    $region2: #{tpu_custom_call.1} parent=1 // loop_pre_header
      _
    $region3: #{tpu_custom_call.1} parent=1 // loop_header
      %s38 = sphi 0, %s42
      %p39 = scmp.ge.s32.totalorder %s38, 8
      %s45 = sphi 0, %s57
      %s46 = sphi 0, %s53
      %s47 = sphi 0, %s45
      %s48 = sphi 0, %s46
      %s49 = sphi 0, %s47
      %s50 = sphi 0, %s48
      %s66 = sphi 0, %s68
      %s69 = sphi 0, %s66
      %s70 = sphi 0, %s69
      %s86 = sphi 0, %s70
      %s100 = sphi 0, %s102
      %s103 = sphi 0, %s100
      %s104 = sphi 0, %s103
      %s120 = sphi 0, %s104
    $region4: #{tpu_custom_call.1} parent=1 // loop_header_branch
      %41 = sbr.rel (%p39) target = $region8
    $region5: #{tpu_custom_call.1} parent=1 // loop_body
      %s43 = ssub.s32 %s38, 1
      %s44 = ssub.s32 %s38, 2
      %s51 = sadd.s32 1, %s46
      %p52 = scmp.ge.s32.totalorder %s51, 3
      %s53 = scalar_select %p52, 0, %s51
      %s54 = sadd.s32 1, %s45
      %s55 = scalar_select %p52, %s54, %s45
      %p56 = scmp.ge.s32.totalorder %s55, 2
      %s57 = scalar_select %p56, 0, %s55
      %s58 = smul.u32 %s45, 3
      %s59 = sadd.s32 %s58, %s46
      %s60 = sld [smem:[#allocation4 + %s59]]
      %s61 = smul.u32 %s57, 3
      %s62 = sadd.s32 %s61, %s53
      %s63 = sld [smem:[#allocation4 + %s62]]
      %s64 = ssub.s32 %s60, %s63
      %p65 = scmp.eq.s32.totalorder %s64, 0
      %s67 = sadd.s32 %s66, 1
      %s68 = scalar_select %p65, %s66, %s67
      %p71 = pneg %p65
      %p72 = scmp.eq.s32.totalorder %s38, 5
      %p73 = por %p71, %p72
      %p74 = scmp.ne.s32.totalorder %s66, %s69
      %p75 = scmp.eq.s32.totalorder %s38, 0
      %p76 = por %p74, %p75
      %p77 = scmp.ne.s32.totalorder %s66, %s69
      %p78 = scmp.eq.s32.totalorder %s43, 5
      %p79 = por %p77, %p78
      %p80 = scmp.ne.s32.totalorder %s69, %s70
      %p81 = scmp.eq.s32.totalorder %s43, 0
      %p82 = por %p80, %p81
      %p83 = scmp.ne.s32.totalorder %s69, %s70
      %p84 = scmp.eq.s32.totalorder %s44, 5
      %p85 = por %p83, %p84
      %p87 = scmp.ne.s32.totalorder %s70, %s86
      %p88 = scmp.eq.s32.totalorder %s44, 0
      %p89 = por %p87, %p88
      %s90 = smul.u32 %s45, 3
      %s91 = sadd.s32 %s90, %s46
      %s92 = sld [smem:[#allocation5 + %s91]]
      %s93 = smul.u32 %s57, 3
      %s94 = sadd.s32 %s93, %s53
      %s95 = sld [smem:[#allocation5 + %s94]]
      %s96 = ssub.s32 %s45, %s57
      %s97 = ssub.s32 %s92, %s95
      %s98 = sor.u32 %s96, %s97
      %p99 = scmp.eq.s32.totalorder %s98, 0
      %s101 = sadd.s32 %s100, 1
      %s102 = scalar_select %p99, %s100, %s101
      %p105 = pneg %p99
      %p106 = scmp.eq.s32.totalorder %s38, 5
      %p107 = por %p105, %p106
      %p108 = scmp.ne.s32.totalorder %s100, %s103
      %p109 = scmp.eq.s32.totalorder %s38, 0
      %p110 = por %p108, %p109
      %p111 = scmp.ne.s32.totalorder %s100, %s103
      %p112 = scmp.eq.s32.totalorder %s43, 5
      %p113 = por %p111, %p112
      %p114 = scmp.ne.s32.totalorder %s103, %s104
      %p115 = scmp.eq.s32.totalorder %s43, 0
      %p116 = por %p114, %p115
      %p117 = scmp.ne.s32.totalorder %s103, %s104
      %p118 = scmp.eq.s32.totalorder %s44, 5
      %p119 = por %p117, %p118
      %p121 = scmp.ne.s32.totalorder %s104, %s120
      %p122 = scmp.eq.s32.totalorder %s44, 0
      %p123 = por %p121, %p122
      %p124 = scmp.le.s32.totalorder 1, %s38
      %p125 = scmp.lt.s32.totalorder %s38, 7
      %p126 = pnand %p124, %p125
      %p127 = pneg %p126
      // Predicated region
      $region9: #{tpu_custom_call.1} parent=5 // pred_check
        _
      $region10: #{tpu_custom_call.1} parent=5 // pred_check_branch
        %129 = sbr.rel (%p126) target = $region12
      $region11: #{tpu_custom_call.1} parent=5 // pred_region
        %s130 = ssub.s32 %s38, 1
      $region12: #{tpu_custom_call.1} parent=5 // pred_fallthru
        _
      %p131 = scmp.lt.s32.totalorder %s38, 6
      // Predicated region
      $region13: #{tpu_custom_call.1} parent=5 // pred_check
        %p132 = pneg %p131
      $region14: #{tpu_custom_call.1} parent=5 // pred_check_branch
        %134 = sbr.rel (%p132) target = $region16
      $region15: #{tpu_custom_call.1} parent=5 // pred_region
        // Predicated region
        $region17: #{tpu_custom_call.1} parent=15 // pred_check
          %p135 = pneg %p76
        $region18: #{tpu_custom_call.1} parent=15 // pred_check_branch
          %137 = sbr.rel (%p135) target = $region20
        $region19: #{tpu_custom_call.1} parent=15 // pred_region
          %s138 = sand.u32 %s66, 1
          %s139 = scalar_lea.sflag [#allocation10], %s138
          %s140 = sand.u32 %s66, 1
          %s141 = smul.addr %s140, 8
          %s142 = scalar_lea.vmem [#allocation9], %s141
          %s143 = smul.u32 %s45, 3
          %s144 = sadd.s32 %s143, %s46
          %s145 = sld [smem:[#allocation4 + %s144]]
          %s147 = ssub.s32 128, 128
          %148 = vsyncadd %s139, %s147
          %s149 = smul.addr %s145, 128
          %s150 = scalar_lea.hbm %s5, %s149
          %s152 = sshll.u32 %s142, 4
          %s153 = int_to_ptr.vmem [resolvable:$true] %s152
          %155 = dma.hbm_to_vmem [thread:$0]  %s150, 128, %s153, %s139
        $region20: #{tpu_custom_call.1} parent=15 // pred_fallthru
          _
      $region16: #{tpu_custom_call.1} parent=5 // pred_fallthru
        _
      %p156 = scmp.le.s32.totalorder 1, %s38
      %p157 = scmp.lt.s32.totalorder %s38, 7
      %p158 = pnand %p156, %p157
      %p159 = pneg %p158
      // Predicated region
      $region21: #{tpu_custom_call.1} parent=5 // pred_check
        _
      $region22: #{tpu_custom_call.1} parent=5 // pred_check_branch
        %161 = sbr.rel (%p158) target = $region24
      $region23: #{tpu_custom_call.1} parent=5 // pred_region
        %s162 = ssub.s32 %s38, 1
        %s163 = sand.u32 %s69, 1
        %s164 = scalar_lea.sflag [#allocation10], %s163
        %s165 = sand.u32 %s69, 1
        %s166 = smul.addr %s165, 8
        %s167 = scalar_lea.vmem [#allocation9], %s166
        // Predicated region
        $region25: #{tpu_custom_call.1} parent=23 // pred_check
          %p168 = pneg %p82
        $region26: #{tpu_custom_call.1} parent=23 // pred_check_branch
          %170 = sbr.rel (%p168) target = $region28
        $region27: #{tpu_custom_call.1} parent=23 // pred_region
          %171 = dma.done %s164, 128
        $region28: #{tpu_custom_call.1} parent=23 // pred_fallthru
          _
        %s172 = sand.u32 %s69, 1
        %s173 = scalar_lea.sflag [#allocation10], %s172
        %s174 = sand.u32 %s69, 1
        %s175 = smul.addr %s174, 8
        %s176 = scalar_lea.vmem [#allocation9], %s175
        %p177 = pneg %p82
        %p178 = pneg %p79
        %p179 = pneg %p116
        %p180 = pneg %p113
        %s181 = sand.u32 %s103, 1
        %s182 = scalar_lea.sflag [#allocation11], %s181
        %s183 = sand.u32 %s103, 1
        %s184 = smul.addr %s183, 8
        %s185 = scalar_lea.vmem [#allocation12], %s184
        %s186 = smul.u32 %s47, 3
        %s187 = sadd.s32 %s186, %s48
        %s188 = sld [smem:[#allocation4 + %s187]]
        %s189 = smul.u32 %s47, 3
        %s190 = sadd.s32 %s189, %s48
        %s191 = sld [smem:[#allocation5 + %s190]]
        %s192 = smul.u32 %s47, 3
        %s193 = sadd.s32 %s192, %s48
        %s194 = sld [smem:[#allocation6 + %s193]]
        %p195 = scmp.eq.s32.totalorder %s194, 1
        // Predicated region
        $region29: #{tpu_custom_call.1} parent=23 // pred_check
          %p196 = pneg %p195
        $region30: #{tpu_custom_call.1} parent=23 // pred_check_branch
          %198 = sbr.rel (%p196) target = $region32
        $region31: #{tpu_custom_call.1} parent=23 // pred_region
          %199 = vst [vmem:[#allocation2] sm:$0xff] 0.0
        $region32: #{tpu_custom_call.1} parent=23 // pred_fallthru
          _
        %s200 = sld [smem:[#allocation8 + %s193]]
        %p201 = scmp.eq.s32.totalorder %s200, 1
        // Predicated region
        $region33: #{tpu_custom_call.1} parent=23 // pred_check
          %p202 = pneg %p201
        $region34: #{tpu_custom_call.1} parent=23 // pred_check_branch
          %204 = sbr.rel (%p202) target = $region36
        $region35: #{tpu_custom_call.1} parent=23 // pred_region
          %v205 = vld [vmem:[%s167] sm:$0xff]
          %v206 = vmul.f32 %v205, %v205
          %v207 = vld [vmem:[#allocation2] sm:$0xff]
          %v208 = vadd.f32 %v206, 0.0
          %v209 = vadd.f32 %v207, %v208
          %210 = vst [vmem:[#allocation2] sm:$0xff] %v209
        $region36: #{tpu_custom_call.1} parent=23 // pred_fallthru
          _
        %s211 = sld [smem:[#allocation7 + %s193]]
        %p212 = scmp.eq.s32.totalorder %s211, 1
        // Predicated region
        $region37: #{tpu_custom_call.1} parent=23 // pred_check
          %p213 = pneg %p212
        $region38: #{tpu_custom_call.1} parent=23 // pred_check_branch
          %215 = sbr.rel (%p213) target = $region40
        $region39: #{tpu_custom_call.1} parent=23 // pred_region
          %v216 = vld [vmem:[#allocation2] sm:$0xff]
          %217 = vst [vmem:[%s185] sm:$0xff] %v216
        $region40: #{tpu_custom_call.1} parent=23 // pred_fallthru
          _
        %s218 = sand.u32 %s103, 1
        %s219 = scalar_lea.sflag [#allocation11], %s218
        %s220 = sand.u32 %s103, 1
        %s221 = smul.addr %s220, 8
        %s222 = scalar_lea.vmem [#allocation12], %s221
        // Predicated region
        $region41: #{tpu_custom_call.1} parent=23 // pred_check
          %p223 = pneg %p113
        $region42: #{tpu_custom_call.1} parent=23 // pred_check_branch
          %225 = sbr.rel (%p223) target = $region44
        $region43: #{tpu_custom_call.1} parent=23 // pred_region
          %s226 = smul.u32 %s47, 3
          %s227 = sadd.s32 %s226, %s48
          %s228 = sld [smem:[#allocation5 + %s227]]
          %s230 = ssub.s32 128, 128
          %231 = vsyncadd %s219, %s230
          %s232 = smul.addr %s47, 4
          %s233 = sadd.s32 %s228, %s232
          %s234 = smul.addr %s233, 128
          %s235 = scalar_lea.hbm %s6, %s234
          %s237 = sshll.u32 %s222, 4
          %s238 = int_to_ptr.vmem [resolvable:$true] %s237
          %240 = dma.vmem_to_hbm [thread:$0]  %s238, 128, %s235, %s219
        $region44: #{tpu_custom_call.1} parent=23 // pred_fallthru
          _
      $region24: #{tpu_custom_call.1} parent=5 // pred_fallthru
        _
      %p241 = scmp.le.s32.totalorder 2, %s38
      // Predicated region
      $region45: #{tpu_custom_call.1} parent=5 // pred_check
        %p242 = pneg %p241
      $region46: #{tpu_custom_call.1} parent=5 // pred_check_branch
        %244 = sbr.rel (%p242) target = $region48
      $region47: #{tpu_custom_call.1} parent=5 // pred_region
        %s245 = ssub.s32 %s38, 2
        // Predicated region
        $region49: #{tpu_custom_call.1} parent=47 // pred_check
          %p246 = pneg %p119
        $region50: #{tpu_custom_call.1} parent=47 // pred_check_branch
          %248 = sbr.rel (%p246) target = $region52
        $region51: #{tpu_custom_call.1} parent=47 // pred_region
          %s249 = sand.u32 %s104, 1
          %s250 = scalar_lea.sflag [#allocation11], %s249
          %s251 = sand.u32 %s104, 1
          %s252 = smul.addr %s251, 8
          %s253 = scalar_lea.vmem [#allocation12], %s252
          %254 = dma.done %s250, 128
        $region52: #{tpu_custom_call.1} parent=47 // pred_fallthru
          _
      $region48: #{tpu_custom_call.1} parent=5 // pred_fallthru
        _
    $region6: #{tpu_custom_call.1} parent=1 // loop_footer
      %s42 = sadd.s32 1, %s38
    $region7: #{tpu_custom_call.1} parent=1 // loop_footer_branch
      %37 = sbr.rel target = $region3
    $region8: #{tpu_custom_call.1} parent=1 // loop_exit
      _
    %255 = vsyncpa [#allocation10], 1
    %s256 = scalar_lea.sflag [#allocation10], 1
    %257 = vsyncpa %s256, 1
    %258 = vsyncpa [#allocation11], 1
    %s259 = scalar_lea.sflag [#allocation11], 1
    %260 = vsyncpa %s259, 1

</llo_original>
